<compile_context>
chip_gen: v5e
topology: v5e:2x2
jax: 0.10.0
libtpu: 0.0.40
codegen_flags: <defaults>
</compile_context>

<pallas_src>
import functools

import jax
import jax.numpy as jnp
from jax.experimental import pallas as pl
from jax.experimental.pallas import tpu as pltpu


def _round_up(x: int, m: int) -> int:
    return ((x + m - 1) // m) * m


def _gcn_layer_kernel(a_ref, z_ref, b_ref, out_ref, acc_ref, *,
                      apply_relu: bool, deg_col: int, z_resident: bool, tk: int):
    """acc += A_tile @ Z'; finalize: dst-degree norm (ones column), bias, relu.

    Grid = (dst_tiles, src_tiles); axis 1 (src) is the reduction axis.
    """
    k = pl.program_id(1)

    @pl.when(k == 0)
    def _init():
        acc_ref[...] = jnp.zeros_like(acc_ref)

    a = a_ref[...]                                   # bf16 {0,1} tile
    if z_resident:
        start = pl.multiple_of(k * tk, tk)
        z = z_ref[pl.ds(start, tk), :]               # resident Z', sliced per step
    else:
        z = z_ref[...]
    # bf16 x bf16 MXU matmul with f32 accumulation.
    acc_ref[...] += jnp.dot(a, z, preferred_element_type=jnp.float32)

    @pl.when(k == pl.num_programs(1) - 1)
    def _finalize():
        acc = acc_ref[...]
        # dst degree = column `deg_col` of acc (Z' carries a ones column there).
        col = jax.lax.broadcasted_iota(jnp.int32, acc.shape, 1)
        deg = jnp.sum(jnp.where(col == deg_col, acc, 0.0), axis=1, keepdims=True)
        norm_dst = jax.lax.rsqrt(jnp.maximum(deg, 1.0))
        h = acc * norm_dst + b_ref[...]
        if apply_relu:
            h = jnp.maximum(h, 0.0)
        out_ref[...] = h.astype(out_ref.dtype)


def gcn_layer(a, x, w, b, *, apply_relu: bool, out_dtype=jnp.float32,
              tile_dst: int = 1024, tile_src: int = 4096):
    """One GraphConv(norm='both', bias) layer on a dense block adjacency (dst x src)."""
    n_dst, n_src = a.shape
    f_in, f_out = w.shape
    assert x.shape == (n_src, f_in)
    b = jnp.asarray(b).reshape(1, f_out)

    # --- src (column) degree norm: the single remaining wrapper pass over A ---
    deg_src = jnp.maximum(jnp.sum(a, axis=0, dtype=jnp.float32), 1.0)
    norm_src = jax.lax.rsqrt(deg_src)

    # --- fold src norm and W into Z'; append a ones column for dst degrees ----
    z = (x.astype(jnp.float32) * norm_src[:, None]) @ w.astype(jnp.float32)
    ones = jnp.ones((n_src, 1), jnp.float32)
    z_aug = jnp.concatenate([z, ones], axis=1)           # (n_src, f_out + 1)

    deg_col = f_out
    f_out_p = _round_up(f_out + 1, 128)                  # lane-dense out / acc

    # --- tile geometry (bf16 wants 16-row granularity on the sublane dim) -----
    tm = min(tile_dst, _round_up(n_dst, 16))
    if tm >= 32 and _round_up(n_dst, tm) // tm < 2:
        tm = _round_up(tm // 2, 16)                      # >=2 dst tiles (v7x 2 TCs)
    tk = min(tile_src, _round_up(n_src, 128))
    n_dst_p = _round_up(n_dst, tm)
    n_src_p = _round_up(n_src, tk)

    a_p = jnp.pad(a.astype(jnp.bfloat16),
                  ((0, n_dst_p - n_dst), (0, n_src_p - n_src)))
    z_p = jnp.pad(z_aug, ((0, n_src_p - n_src),
                          (0, f_out_p - (f_out + 1)))).astype(jnp.bfloat16)
    b_p = jnp.pad(b.astype(jnp.float32), ((0, 0), (0, f_out_p - f_out)))

    grid = (n_dst_p // tm, n_src_p // tk)

    # Keep Z' resident in VMEM (DMA'd once) when small enough; otherwise stream
    # a (tk, f_out_p) tile per reduction step (only 128 lanes wide -> cheap).
    z_resident = (n_src_p * f_out_p * 2) <= (8 << 20)
    if z_resident:
        z_spec = pl.BlockSpec((n_src_p, f_out_p), lambda i, k: (0, 0))
    else:
        z_spec = pl.BlockSpec((tk, f_out_p), lambda i, k: (k, 0))

    out_bytes = jnp.dtype(out_dtype).itemsize
    vmem_bytes = (2 * tm * tk * 2                                        # A tiles (bf16)
                  + 2 * (n_src_p if z_resident else tk) * f_out_p * 2    # Z' (bf16)
                  + 2 * f_out_p * 4                                      # bias
                  + 2 * tm * f_out_p * out_bytes                         # out tiles
                  + tm * f_out_p * 4)                                    # accumulator
    try:  # generation-aware cap: 64 MiB physical on v7x, 128 MiB on v5e/v6e.
        vmem_cap = int(pltpu.get_tpu_info().vmem_capacity_bytes)
    except Exception:
        vmem_cap = 64 << 20
    vmem_limit = max(16 << 20, min(vmem_bytes + (4 << 20), vmem_cap - (8 << 20)))

    out_p = pl.pallas_call(
        functools.partial(_gcn_layer_kernel, apply_relu=apply_relu,
                          deg_col=deg_col, z_resident=z_resident, tk=tk),
        out_shape=jax.ShapeDtypeStruct((n_dst_p, f_out_p), out_dtype),
        grid_spec=pltpu.PrefetchScalarGridSpec(
            num_scalar_prefetch=0,
            grid=grid,
            in_specs=[
                pl.BlockSpec((tm, tk), lambda i, k: (i, k)),       # A (bf16)
                z_spec,                                            # Z' (bf16)
                pl.BlockSpec((1, f_out_p), lambda i, k: (0, 0)),   # bias
            ],
            out_specs=pl.BlockSpec((tm, f_out_p), lambda i, k: (i, 0)),
            scratch_shapes=[pltpu.VMEM((tm, f_out_p), jnp.float32)],
        ),
        compiler_params=pltpu.CompilerParams(
            dimension_semantics=("parallel", "arbitrary"),
            vmem_limit_bytes=int(vmem_limit),
        ),
    )(a_p, z_p, b_p)

    return out_p[:n_dst, :f_out]


@jax.jit
def model_gcn_forward(a1, a2, x, w1, b1, w2, b2):
    """Forward pass of Model_GCN with dense block (MFG) adjacencies (dst x src)."""
    h = gcn_layer(a1, x, w1, b1, apply_relu=True, out_dtype=jnp.bfloat16)   # conv1 + relu
    h = gcn_layer(a2, h, w2, b2, apply_relu=False, out_dtype=jnp.float32)   # conv2
    return h


def _reference(a1, a2, x, w1, b1, w2, b2):
    def layer(a, x, w, b, relu):
        ns = jnp.maximum(a.sum(0), 1.0) ** -0.5
        nd = jnp.maximum(a.sum(1), 1.0) ** -0.5
        h = ((a * ns[None, :]) @ x) @ w * nd[:, None] + b
        return jnp.maximum(h, 0.0) if relu else h
    return layer(a2, layer(a1, x, w1, b1, True), w2, b2, False)


if __name__ == "__main__":
    # Small synthetic MFG sizes: 16 src nodes -> 12 dst (block 1) -> 8 dst (block 2)
    N0, N1, N2 = 16, 12, 8
    in_feats, h_feats, num_classes = 8, 32, 4

    key = jax.random.PRNGKey(0)
    k_x, k_a1, k_a2, k_w1, k_w2 = jax.random.split(key, 5)

    x = jax.random.normal(k_x, (N0, in_feats), dtype=jnp.float32)

    # Dense block adjacencies (dst x src), deterministic random sparsity ~0.3.
    a1 = (jax.random.uniform(k_a1, (N1, N0)) < 0.3).astype(jnp.float32)
    a2 = (jax.random.uniform(k_a2, (N2, N1)) < 0.3).astype(jnp.float32)

    # Deterministic parameter init (Glorot-like scale, zero bias like DGL).
    w1 = jax.random.normal(k_w1, (in_feats, h_feats), dtype=jnp.float32) * (
        (2.0 / (in_feats + h_feats)) ** 0.5)
    b1 = jnp.zeros((1, h_feats), dtype=jnp.float32)
    w2 = jax.random.normal(k_w2, (h_feats, num_classes), dtype=jnp.float32) * (
        (2.0 / (h_feats + num_classes)) ** 0.5)
    b2 = jnp.zeros((1, num_classes), dtype=jnp.float32)

    out = model_gcn_forward(a1, a2, x, w1, b1, w2, b2)
    out = jax.block_until_ready(out)

    ref = _reference(a1, a2, x, w1, b1, w2, b2)
    assert out.shape == (N2, num_classes)
    # bf16 Z'/intermediate -> loosen tolerance vs. the pure-f32 reference.
    assert jnp.allclose(out, ref, atol=2e-2, rtol=2e-2), (
        f"max abs err = {jnp.max(jnp.abs(out - ref))}")

    print("KERNEL_OK")
</pallas_src>

<mosaic_0001>
module attributes {stable_mosaic.version = 11 : i64} {
  func.func @_gcn_layer_kernel(%arg0: i32, %arg1: i32, %arg2: memref<16x128xbf16, #tpu.memory_space<vmem>>, %arg3: memref<128x128xbf16, #tpu.memory_space<vmem>>, %arg4: memref<1x128xf32, #tpu.memory_space<vmem>>, %arg5: memref<16x128xf32, #tpu.memory_space<vmem>>, %arg6: memref<16x128xf32, #tpu.memory_space<vmem>>) attributes {dimension_semantics = [#tpu.dimension_semantics<parallel>, #tpu.dimension_semantics<arbitrary>], iteration_bounds = array<i64: 1, 1>, scalar_prefetch = 0 : i64, scratch_operands = 1 : i64, tpu.core_type = #tpu.core_type<tc>, window_params = [{transform_indices = @transform_0, window_bounds = array<i64: 16, 128>}, {pipeline_mode = #tpu.pipeline_mode<synchronous>, transform_indices = @transform_1, window_bounds = array<i64: 128, 128>}, {pipeline_mode = #tpu.pipeline_mode<synchronous>, transform_indices = @transform_2, window_bounds = array<i64: 1, 128>}, {transform_indices = @transform_3, window_bounds = array<i64: 16, 128>}]} {
    %c0_i32 = arith.constant 0 : i32
    %0 = arith.cmpi eq, %arg1, %c0_i32 : i32
    %1 = arith.extui %0 : i1 to i32
    %c0_i32_0 = arith.constant 0 : i32
    %2 = arith.cmpi ne, %1, %c0_i32_0 : i32
    scf.if %2 {
      %cst_9 = arith.constant 0.000000e+00 : f32
      %15 = vector.broadcast %cst_9 : f32 to vector<16x128xf32>
      %c0_10 = arith.constant 0 : index
      %c0_11 = arith.constant 0 : index
      %16 = vector.load %arg6[%c0_10, %c0_11] : memref<16x128xf32, #tpu.memory_space<vmem>>, vector<16x128xf32>
      tpu.vector_store %arg6[%c0_10, %c0_11], %15 {strides = array<i32>} : memref<16x128xf32, #tpu.memory_space<vmem>>, vector<16x128xf32>,
    } else {
    }
    %c0 = arith.constant 0 : index
    %c0_1 = arith.constant 0 : index
    %3 = vector.load %arg2[%c0, %c0_1] : memref<16x128xbf16, #tpu.memory_space<vmem>>, vector<16x128xbf16>
    %c128_i32 = arith.constant 128 : i32
    %4 = arith.muli %arg1, %c128_i32 : i32
    %5 = tpu.assume_multiple %4, 128 : i32
    %6 = arith.index_cast %5 : i32 to index
    %c0_2 = arith.constant 0 : index
    %7 = vector.load %arg3[%6, %c0_2] : memref<128x128xbf16, #tpu.memory_space<vmem>>, vector<128x128xbf16>
    %c0_3 = arith.constant 0 : index
    %c0_4 = arith.constant 0 : index
    %8 = vector.load %arg6[%c0_3, %c0_4] : memref<16x128xf32, #tpu.memory_space<vmem>>, vector<16x128xf32>
    %cst = arith.constant dense<0.000000e+00> : vector<16x128xf32>
    %9 = tpu.matmul %3, %7, %cst {dimension_numbers = #tpu.dot_dimension_numbers<[1], [0], [0], [1], [0, 0, 1, 1], [], []>} : vector<16x128xbf16>, vector<128x128xbf16>, vector<16x128xf32> -> vector<16x128xf32>
    %10 = arith.addf %8, %9 : vector<16x128xf32>
    %c0_5 = arith.constant 0 : index
    %c0_6 = arith.constant 0 : index
    %11 = vector.load %arg6[%c0_5, %c0_6] : memref<16x128xf32, #tpu.memory_space<vmem>>, vector<16x128xf32>
    tpu.vector_store %arg6[%c0_5, %c0_6], %10 {strides = array<i32>} : memref<16x128xf32, #tpu.memory_space<vmem>>, vector<16x128xf32>,
    %c0_i32_7 = arith.constant 0 : i32
    %12 = arith.cmpi eq, %arg1, %c0_i32_7 : i32
    %13 = arith.extui %12 : i1 to i32
    %c0_i32_8 = arith.constant 0 : i32
    %14 = arith.cmpi ne, %13, %c0_i32_8 : i32
    scf.if %14 {
      %c0_9 = arith.constant 0 : index
      %c0_10 = arith.constant 0 : index
      %15 = vector.load %arg6[%c0_9, %c0_10] : memref<16x128xf32, #tpu.memory_space<vmem>>, vector<16x128xf32>
      %16 = tpu.iota {dimensions = array<i32: 1>} : vector<16x128xi32>
      %c4_i32 = arith.constant 4 : i32
      %17 = vector.broadcast %c4_i32 : i32 to vector<16x128xi32>
      %18 = arith.cmpi eq, %16, %17 : vector<16x128xi32>
      %cst_11 = arith.constant 0.000000e+00 : f32
      %19 = vector.broadcast %cst_11 : f32 to vector<16x128xf32>
      %20 = arith.select %18, %15, %19 : vector<16x128xi1>, vector<16x128xf32>
      %cst_12 = arith.constant dense<0.000000e+00> : vector<16xf32>
      %21 = vector.multi_reduction <add>, %20, %cst_12 [1] : vector<16x128xf32> to vector<16xf32>
      %22 = vector.shape_cast %21 : vector<16xf32> to vector<16x1xf32>
      %cst_13 = arith.constant 1.000000e+00 : f32
      %23 = vector.broadcast %cst_13 : f32 to vector<16x1xf32>
      %24 = arith.maximumf %22, %23 : vector<16x1xf32>
      %25 = math.rsqrt %24 : vector<16x1xf32>
      %26 = vector.broadcast %25 : vector<16x1xf32> to vector<16x128xf32>
      %27 = arith.mulf %15, %26 : vector<16x128xf32>
      %c0_14 = arith.constant 0 : index
      %c0_15 = arith.constant 0 : index
      %28 = vector.load %arg4[%c0_14, %c0_15] : memref<1x128xf32, #tpu.memory_space<vmem>>, vector<1x128xf32>
      %29 = vector.broadcast %28 : vector<1x128xf32> to vector<16x128xf32>
      %30 = arith.addf %27, %29 : vector<16x128xf32>
      %c0_16 = arith.constant 0 : index
      %c0_17 = arith.constant 0 : index
      %31 = vector.load %arg5[%c0_16, %c0_17] : memref<16x128xf32, #tpu.memory_space<vmem>>, vector<16x128xf32>
      tpu.vector_store %arg5[%c0_16, %c0_17], %30 {strides = array<i32>} : memref<16x128xf32, #tpu.memory_space<vmem>>, vector<16x128xf32>,
    } else {
    }
    return
  }
  func.func @transform_0(%arg0: i32, %arg1: i32) -> (i32, i32) {
    %c0_i32 = arith.constant 0 : i32
    return %arg0, %arg1 : i32, i32
  }
  func.func @transform_1(%arg0: i32, %arg1: i32) -> (i32, i32) {
    %c0_i32 = arith.constant 0 : i32
    %c0_i32_0 = arith.constant 0 : i32
    %c0_i32_1 = arith.constant 0 : i32
    return %c0_i32, %c0_i32_0 : i32, i32
  }
  func.func @transform_2(%arg0: i32, %arg1: i32) -> (i32, i32) {
    %c0_i32 = arith.constant 0 : i32
    %c0_i32_0 = arith.constant 0 : i32
    %c0_i32_1 = arith.constant 0 : i32
    return %c0_i32, %c0_i32_0 : i32, i32
  }
  func.func @transform_3(%arg0: i32, %arg1: i32) -> (i32, i32) {
    %c0_i32 = arith.constant 0 : i32
    %c0_i32_0 = arith.constant 0 : i32
    return %arg0, %c0_i32 : i32, i32
  }
}

module attributes {stable_mosaic.version = 11 : i64} {
  func.func @_gcn_layer_kernel(%arg0: i32, %arg1: i32, %arg2: memref<16x128xbf16, #tpu.memory_space<vmem>>, %arg3: memref<128x128xbf16, #tpu.memory_space<vmem>>, %arg4: memref<1x128xf32, #tpu.memory_space<vmem>>, %arg5: memref<16x128xbf16, #tpu.memory_space<vmem>>, %arg6: memref<16x128xf32, #tpu.memory_space<vmem>>) attributes {dimension_semantics = [#tpu.dimension_semantics<parallel>, #tpu.dimension_semantics<arbitrary>], iteration_bounds = array<i64: 1, 1>, scalar_prefetch = 0 : i64, scratch_operands = 1 : i64, tpu.core_type = #tpu.core_type<tc>, window_params = [{transform_indices = @transform_0, window_bounds = array<i64: 16, 128>}, {pipeline_mode = #tpu.pipeline_mode<synchronous>, transform_indices = @transform_1, window_bounds = array<i64: 128, 128>}, {pipeline_mode = #tpu.pipeline_mode<synchronous>, transform_indices = @transform_2, window_bounds = array<i64: 1, 128>}, {transform_indices = @transform_3, window_bounds = array<i64: 16, 128>}]} {
    %c0_i32 = arith.constant 0 : i32
    %0 = arith.cmpi eq, %arg1, %c0_i32 : i32
    %1 = arith.extui %0 : i1 to i32
    %c0_i32_0 = arith.constant 0 : i32
    %2 = arith.cmpi ne, %1, %c0_i32_0 : i32
    scf.if %2 {
      %cst_9 = arith.constant 0.000000e+00 : f32
      %15 = vector.broadcast %cst_9 : f32 to vector<16x128xf32>
      %c0_10 = arith.constant 0 : index
      %c0_11 = arith.constant 0 : index
      %16 = vector.load %arg6[%c0_10, %c0_11] : memref<16x128xf32, #tpu.memory_space<vmem>>, vector<16x128xf32>
      tpu.vector_store %arg6[%c0_10, %c0_11], %15 {strides = array<i32>} : memref<16x128xf32, #tpu.memory_space<vmem>>, vector<16x128xf32>,
    } else {
    }
    %c0 = arith.constant 0 : index
    %c0_1 = arith.constant 0 : index
    %3 = vector.load %arg2[%c0, %c0_1] : memref<16x128xbf16, #tpu.memory_space<vmem>>, vector<16x128xbf16>
    %c128_i32 = arith.constant 128 : i32
    %4 = arith.muli %arg1, %c128_i32 : i32
    %5 = tpu.assume_multiple %4, 128 : i32
    %6 = arith.index_cast %5 : i32 to index
    %c0_2 = arith.constant 0 : index
    %7 = vector.load %arg3[%6, %c0_2] : memref<128x128xbf16, #tpu.memory_space<vmem>>, vector<128x128xbf16>
    %c0_3 = arith.constant 0 : index
    %c0_4 = arith.constant 0 : index
    %8 = vector.load %arg6[%c0_3, %c0_4] : memref<16x128xf32, #tpu.memory_space<vmem>>, vector<16x128xf32>
    %cst = arith.constant dense<0.000000e+00> : vector<16x128xf32>
    %9 = tpu.matmul %3, %7, %cst {dimension_numbers = #tpu.dot_dimension_numbers<[1], [0], [0], [1], [0, 0, 1, 1], [], []>} : vector<16x128xbf16>, vector<128x128xbf16>, vector<16x128xf32> -> vector<16x128xf32>
    %10 = arith.addf %8, %9 : vector<16x128xf32>
    %c0_5 = arith.constant 0 : index
    %c0_6 = arith.constant 0 : index
    %11 = vector.load %arg6[%c0_5, %c0_6] : memref<16x128xf32, #tpu.memory_space<vmem>>, vector<16x128xf32>
    tpu.vector_store %arg6[%c0_5, %c0_6], %10 {strides = array<i32>} : memref<16x128xf32, #tpu.memory_space<vmem>>, vector<16x128xf32>,
    %c0_i32_7 = arith.constant 0 : i32
    %12 = arith.cmpi eq, %arg1, %c0_i32_7 : i32
    %13 = arith.extui %12 : i1 to i32
    %c0_i32_8 = arith.constant 0 : i32
    %14 = arith.cmpi ne, %13, %c0_i32_8 : i32
    scf.if %14 {
      %c0_9 = arith.constant 0 : index
      %c0_10 = arith.constant 0 : index
      %15 = vector.load %arg6[%c0_9, %c0_10] : memref<16x128xf32, #tpu.memory_space<vmem>>, vector<16x128xf32>
      %16 = tpu.iota {dimensions = array<i32: 1>} : vector<16x128xi32>
      %c32_i32 = arith.constant 32 : i32
      %17 = vector.broadcast %c32_i32 : i32 to vector<16x128xi32>
      %18 = arith.cmpi eq, %16, %17 : vector<16x128xi32>
      %cst_11 = arith.constant 0.000000e+00 : f32
      %19 = vector.broadcast %cst_11 : f32 to vector<16x128xf32>
      %20 = arith.select %18, %15, %19 : vector<16x128xi1>, vector<16x128xf32>
      %cst_12 = arith.constant dense<0.000000e+00> : vector<16xf32>
      %21 = vector.multi_reduction <add>, %20, %cst_12 [1] : vector<16x128xf32> to vector<16xf32>
      %22 = vector.shape_cast %21 : vector<16xf32> to vector<16x1xf32>
      %cst_13 = arith.constant 1.000000e+00 : f32
      %23 = vector.broadcast %cst_13 : f32 to vector<16x1xf32>
      %24 = arith.maximumf %22, %23 : vector<16x1xf32>
      %25 = math.rsqrt %24 : vector<16x1xf32>
      %26 = vector.broadcast %25 : vector<16x1xf32> to vector<16x128xf32>
      %27 = arith.mulf %15, %26 : vector<16x128xf32>
      %c0_14 = arith.constant 0 : index
      %c0_15 = arith.constant 0 : index
      %28 = vector.load %arg4[%c0_14, %c0_15] : memref<1x128xf32, #tpu.memory_space<vmem>>, vector<1x128xf32>
      %29 = vector.broadcast %28 : vector<1x128xf32> to vector<16x128xf32>
      %30 = arith.addf %27, %29 : vector<16x128xf32>
      %cst_16 = arith.constant 0.000000e+00 : f32
      %31 = vector.broadcast %cst_16 : f32 to vector<16x128xf32>
      %32 = arith.maximumf %30, %31 : vector<16x128xf32>
      %33 = arith.truncf %32 : vector<16x128xf32> to vector<16x128xbf16>
      %c0_17 = arith.constant 0 : index
      %c0_18 = arith.constant 0 : index
      %34 = vector.load %arg5[%c0_17, %c0_18] : memref<16x128xbf16, #tpu.memory_space<vmem>>, vector<16x128xbf16>
      tpu.vector_store %arg5[%c0_17, %c0_18], %33 {strides = array<i32>} : memref<16x128xbf16, #tpu.memory_space<vmem>>, vector<16x128xbf16>,
    } else {
    }
    return
  }
  func.func @transform_0(%arg0: i32, %arg1: i32) -> (i32, i32) {
    %c0_i32 = arith.constant 0 : i32
    return %arg0, %arg1 : i32, i32
  }
  func.func @transform_1(%arg0: i32, %arg1: i32) -> (i32, i32) {
    %c0_i32 = arith.constant 0 : i32
    %c0_i32_0 = arith.constant 0 : i32
    %c0_i32_1 = arith.constant 0 : i32
    return %c0_i32, %c0_i32_0 : i32, i32
  }
  func.func @transform_2(%arg0: i32, %arg1: i32) -> (i32, i32) {
    %c0_i32 = arith.constant 0 : i32
    %c0_i32_0 = arith.constant 0 : i32
    %c0_i32_1 = arith.constant 0 : i32
    return %c0_i32, %c0_i32_0 : i32, i32
  }
  func.func @transform_3(%arg0: i32, %arg1: i32) -> (i32, i32) {
    %c0_i32 = arith.constant 0 : i32
    %c0_i32_0 = arith.constant 0 : i32
    return %arg0, %c0_i32 : i32, i32
  }
}

</mosaic_0001>

<llo_original>
// kernel: model_gcn_forward.2
$region0: #{model_gcn_forward.2}
  #allocation0 [shape = 'u32[]', space=smem, size = 0x4, offset = 0x4, fixed_abs, tag = 'smem constant byte address 0x4 - core index']
  #allocation1 [shape = 'u32[72,128]{1,0:T(1,128)}', space=vmem, size = 0x9000, scoped, tag = 'internal scratch']
  #allocation2 [shape = 'f32[16,128]{1,0:T(8,128)}', space=vmem, size = 0x2000, scoped, tag = 'scratch operand']
  %s0 = inlined_call_operand.vmem [shape: bf16[16,128], index: 0, kind: input, shape index: {}]
  %s1 = inlined_call_operand.vmem [shape: bf16[128,128], index: 1, kind: input, shape index: {}]
  %s2 = inlined_call_operand.vmem [shape: f32[1,128], index: 2, kind: input, shape index: {}]
  %s3 = inlined_call_operand.vmem [shape: bf16[16,128], index: 3, kind: output, shape index: {}]
  %s4 = sld [smem:[#allocation0]]
  $region30: #{model_gcn_forward.2} parent=0
    _
  %s6 = ssub.s32 1, %s4
  %s7 = scalar_select 0, %s6, %s4
  // Predicated region
  $region2: #{model_gcn_forward.2} parent=0 // pred_check
    _
  $region3: #{model_gcn_forward.2} parent=0 // pred_check_branch
    %9 = sbr.rel (0) target = $region5
  $region4: #{model_gcn_forward.2} parent=0 // pred_region
    _
  $region5: #{model_gcn_forward.2} parent=0 // pred_fallthru
    _
  // Predicated region
  $region6: #{model_gcn_forward.2} parent=0 // pred_check
    _
  $region7: #{model_gcn_forward.2} parent=0 // pred_check_branch
    %11 = sbr.rel (0) target = $region9
  $region8: #{model_gcn_forward.2} parent=0 // pred_region
    _
  $region9: #{model_gcn_forward.2} parent=0 // pred_fallthru
    _
  // Predicated region
  $region10: #{model_gcn_forward.2} parent=0 // pred_check
    _
  $region11: #{model_gcn_forward.2} parent=0 // pred_check_branch
    %13 = sbr.rel (0) target = $region13
  $region12: #{model_gcn_forward.2} parent=0 // pred_region
    _
  $region13: #{model_gcn_forward.2} parent=0 // pred_fallthru
    _
  %p14 = scmp.eq.s32.totalorder 0, 0
  // Predicated region
  $region14: #{model_gcn_forward.2} parent=0 // pred_check
    %p15 = pneg %p14
  $region15: #{model_gcn_forward.2} parent=0 // pred_check_branch
    %17 = sbr.rel (%p15) target = $region17
  $region16: #{model_gcn_forward.2} parent=0 // pred_region
    %18 = vst [vmem:[#allocation2] sm:$0xff] 0.0
    %19 = vst [vmem:[#allocation2 + $0x8] sm:$0xff] 0.0
  $region17: #{model_gcn_forward.2} parent=0 // pred_fallthru
    _
  %v20 = vld [vmem:[%s0] sm:$0xf]
  %v21 = vld [vmem:[%s0 + $0x4] sm:$0xf]
  %s22 = smul.u32 0, 128
  %s23 = sshra.s32 %s22, 3
  %s24 = sand.u32 %s22, 7
  %s25 = smul.addr %s23, 4
  %s26 = scalar_lea.vmem %s1, %s25
  %v27 = vld [vmem:[%s26] sm:$0xf]
  %v28 = vld [vmem:[%s26 + $0x4] sm:$0xf]
  %v29 = vld [vmem:[%s26 + $0x8] sm:$0xf]
  %v30 = vld [vmem:[%s26 + $0xc] sm:$0xf]
  %v31 = vld [vmem:[%s26 + $0x10] sm:$0xf]
  %v32 = vld [vmem:[%s26 + $0x14] sm:$0xf]
  %v33 = vld [vmem:[%s26 + $0x18] sm:$0xf]
  %v34 = vld [vmem:[%s26 + $0x1c] sm:$0xf]
  %v35 = vld [vmem:[%s26 + $0x20] sm:$0xf]
  %v36 = vld [vmem:[%s26 + $0x24] sm:$0xf]
  %v37 = vld [vmem:[%s26 + $0x28] sm:$0xf]
  %v38 = vld [vmem:[%s26 + $0x2c] sm:$0xf]
  %v39 = vld [vmem:[%s26 + $0x30] sm:$0xf]
  %v40 = vld [vmem:[%s26 + $0x34] sm:$0xf]
  %v41 = vld [vmem:[%s26 + $0x38] sm:$0xf]
  %v42 = vld [vmem:[%s26 + $0x3c] sm:$0xf]
  %v43 = vld [vmem:[#allocation2] sm:$0xff]
  %v44 = vld [vmem:[#allocation2 + $0x8] sm:$0xff]
  %v47 = vunpack.c.l.b16 %v20
  %v48 = vunpack.c.l.b16 %v21
  %v49 = vpack.c.b16 %v48, %v47
  %v67 = vunpack.c.l.b16 %v27
  %v68 = vunpack.c.l.b16 %v28
  %v69 = vunpack.c.l.b16 %v29
  %v70 = vunpack.c.l.b16 %v30
  %v71 = vunpack.c.l.b16 %v31
  %v72 = vunpack.c.l.b16 %v32
  %v73 = vunpack.c.l.b16 %v33
  %v74 = vunpack.c.l.b16 %v34
  %v75 = vunpack.c.l.b16 %v35
  %v76 = vunpack.c.l.b16 %v36
  %v77 = vunpack.c.l.b16 %v37
  %v78 = vunpack.c.l.b16 %v38
  %v79 = vunpack.c.l.b16 %v39
  %v80 = vunpack.c.l.b16 %v40
  %v81 = vunpack.c.l.b16 %v41
  %v82 = vunpack.c.l.b16 %v42
  %v83 = vpack.c.b16 %v68, %v67
  %v84 = vpack.c.b16 %v70, %v69
  %v85 = vpack.c.b16 %v72, %v71
  %v86 = vpack.c.b16 %v74, %v73
  %v87 = vpack.c.b16 %v76, %v75
  %v88 = vpack.c.b16 %v78, %v77
  %v89 = vpack.c.b16 %v80, %v79
  %v90 = vpack.c.b16 %v82, %v81
  %99 = vmatpush.bf16.msra.mxu0 %v90
  %100 = vmatpush.bf16.msra.mxu0 %v89
  %101 = vmatpush.bf16.msra.mxu0 %v88
  %102 = vmatpush.bf16.msra.mxu0 %v87
  %103 = vmatpush.bf16.msra.mxu0 %v86
  %104 = vmatpush.bf16.msra.mxu0 %v85
  %105 = vmatpush.bf16.msra.mxu0 %v84
  %106 = vmatpush.bf16.msra.mxu0 %v83
  %107 = vmatmul.bf16.gmra.mxu0 %v49
  %v108 = vpop.f32.mrf.mxu0
  %v109 = vadd.f32 0.0, %v108
  %v110 = vpop.f32.mrf.mxu0
  %v111 = vadd.f32 0.0, %v110
  %112 = vdwg.mxu0
  %v113 = vadd.f32 %v43, %v109
  %v114 = vadd.f32 %v44, %v111
  %115 = vst [vmem:[#allocation2] sm:$0xff] %v113
  %116 = vst [vmem:[#allocation2 + $0x8] sm:$0xff] %v114
  // Predicated region
  $region18: #{model_gcn_forward.2} parent=0 // pred_check
    %p117 = pneg %p14
  $region19: #{model_gcn_forward.2} parent=0 // pred_check_branch
    %119 = sbr.rel (%p117) target = $region21
  $region20: #{model_gcn_forward.2} parent=0 // pred_region
    %v120 = vld [vmem:[#allocation2] sm:$0xff]
    %v121 = vld [vmem:[#allocation2 + $0x8] sm:$0xff]
    %v122 = vlaneseq
    %v123 = vand.u32 %v122, 127
    %vm124 = vcmp.eq.s32.totalorder %v123, 32
    %v125 = vsel %vm124, %v120, 0.0
    %v126 = vsel %vm124, %v121, 0.0
    %127 = vadd.xlane.f32.xlu0 %v125
    %v128 = vpop.xlane.xlu0 %127
    %129 = vadd.xlane.f32.xlu0 %v126
    %v130 = vpop.xlane.xlu0 %129
    %v131 = vmax.f32 %v128, 1.0
    %v132 = vmax.f32 %v130, 1.0
    %v133 = vrsqrt.pop %v131
    %v134 = vmul.f32 %v133, %v131
    %v135 = vmul.f32 %v134, %v133
    %v136 = vmul.f32 0.5, %v135
    %v137 = vsub.f32 1.5, %v136
    %v138 = vmul.f32 %v133, %v137
    %vm139 = vweird.f32 %v131
    %vm140 = vweird.f32 %v133
    %vm141 = vmor %vm139, %vm140
    %v142 = vsel %vm141, %v133, %v138
    %v143 = vrsqrt.pop %v132
    %v144 = vmul.f32 %v143, %v132
    %v145 = vmul.f32 %v144, %v143
    %v146 = vmul.f32 0.5, %v145
    %v147 = vsub.f32 1.5, %v146
    %v148 = vmul.f32 %v143, %v147
    %vm149 = vweird.f32 %v132
    %vm150 = vweird.f32 %v143
    %vm151 = vmor %vm149, %vm150
    %v152 = vsel %vm151, %v143, %v148
    %v153 = vmul.f32 %v120, %v142
    %v154 = vmul.f32 %v121, %v152
    %v155 = vld [vmem:[%s2] sm:$0x1]
    %v157 = vperm.slane %v155, 0
    %v159 = vadd.f32 %v153, %v157
    %v160 = vadd.f32 %v154, %v157
    %v161 = vmax.f32 %v159, 0.0
    %v162 = vmax.f32 %v160, 0.0
    %v163 = vpack.c.bf16 %v161, %v161
    %v164 = vpack.c.bf16 %v162, %v162
    %165 = vst [vmem:[%s3] sm:$0xf] %v163
    %166 = vst [vmem:[%s3 + $0x4] sm:$0xf] %v164
  $region21: #{model_gcn_forward.2} parent=0 // pred_fallthru
    _
  // Predicated region
  $region22: #{model_gcn_forward.2} parent=0 // pred_check
    _
  $region23: #{model_gcn_forward.2} parent=0 // pred_check_branch
    %168 = sbr.rel (0) target = $region25
  $region24: #{model_gcn_forward.2} parent=0 // pred_region
    _
  $region25: #{model_gcn_forward.2} parent=0 // pred_fallthru
    _
  // Predicated region
  $region26: #{model_gcn_forward.2} parent=0 // pred_check
    _
  $region27: #{model_gcn_forward.2} parent=0 // pred_check_branch
    %170 = sbr.rel (0) target = $region29
  $region28: #{model_gcn_forward.2} parent=0 // pred_region
    _
  $region29: #{model_gcn_forward.2} parent=0 // pred_fallthru
    _

// kernel: model_gcn_forward.3
$region0: #{model_gcn_forward.3}
  #allocation0 [shape = 'u32[]', space=smem, size = 0x4, offset = 0x4, fixed_abs, tag = 'smem constant byte address 0x4 - core index']
  #allocation1 [shape = 'u32[72,128]{1,0:T(1,128)}', space=vmem, size = 0x9000, scoped, tag = 'internal scratch']
  #allocation2 [shape = 'f32[16,128]{1,0:T(8,128)}', space=vmem, size = 0x2000, scoped, tag = 'scratch operand']
  %s0 = inlined_call_operand.vmem [shape: bf16[16,128], index: 0, kind: input, shape index: {}]
  %s1 = inlined_call_operand.vmem [shape: bf16[128,128], index: 1, kind: input, shape index: {}]
  %s2 = inlined_call_operand.vmem [shape: f32[1,128], index: 2, kind: input, shape index: {}]
  %s3 = inlined_call_operand.vmem [shape: f32[16,128], index: 3, kind: output, shape index: {}]
  %s4 = sld [smem:[#allocation0]]
  $region30: #{model_gcn_forward.3} parent=0
    _
  %s6 = ssub.s32 1, %s4
  %s7 = scalar_select 0, %s6, %s4
  // Predicated region
  $region2: #{model_gcn_forward.3} parent=0 // pred_check
    _
  $region3: #{model_gcn_forward.3} parent=0 // pred_check_branch
    %9 = sbr.rel (0) target = $region5
  $region4: #{model_gcn_forward.3} parent=0 // pred_region
    _
  $region5: #{model_gcn_forward.3} parent=0 // pred_fallthru
    _
  // Predicated region
  $region6: #{model_gcn_forward.3} parent=0 // pred_check
    _
  $region7: #{model_gcn_forward.3} parent=0 // pred_check_branch
    %11 = sbr.rel (0) target = $region9
  $region8: #{model_gcn_forward.3} parent=0 // pred_region
    _
  $region9: #{model_gcn_forward.3} parent=0 // pred_fallthru
    _
  // Predicated region
  $region10: #{model_gcn_forward.3} parent=0 // pred_check
    _
  $region11: #{model_gcn_forward.3} parent=0 // pred_check_branch
    %13 = sbr.rel (0) target = $region13
  $region12: #{model_gcn_forward.3} parent=0 // pred_region
    _
  $region13: #{model_gcn_forward.3} parent=0 // pred_fallthru
    _
  %p14 = scmp.eq.s32.totalorder 0, 0
  // Predicated region
  $region14: #{model_gcn_forward.3} parent=0 // pred_check
    %p15 = pneg %p14
  $region15: #{model_gcn_forward.3} parent=0 // pred_check_branch
    %17 = sbr.rel (%p15) target = $region17
  $region16: #{model_gcn_forward.3} parent=0 // pred_region
    %18 = vst [vmem:[#allocation2] sm:$0xff] 0.0
    %19 = vst [vmem:[#allocation2 + $0x8] sm:$0xff] 0.0
  $region17: #{model_gcn_forward.3} parent=0 // pred_fallthru
    _
  %v20 = vld [vmem:[%s0] sm:$0xf]
  %v21 = vld [vmem:[%s0 + $0x4] sm:$0xf]
  %s22 = smul.u32 0, 128
  %s23 = sshra.s32 %s22, 3
  %s24 = sand.u32 %s22, 7
  %s25 = smul.addr %s23, 4
  %s26 = scalar_lea.vmem %s1, %s25
  %v27 = vld [vmem:[%s26] sm:$0xf]
  %v28 = vld [vmem:[%s26 + $0x4] sm:$0xf]
  %v29 = vld [vmem:[%s26 + $0x8] sm:$0xf]
  %v30 = vld [vmem:[%s26 + $0xc] sm:$0xf]
  %v31 = vld [vmem:[%s26 + $0x10] sm:$0xf]
  %v32 = vld [vmem:[%s26 + $0x14] sm:$0xf]
  %v33 = vld [vmem:[%s26 + $0x18] sm:$0xf]
  %v34 = vld [vmem:[%s26 + $0x1c] sm:$0xf]
  %v35 = vld [vmem:[%s26 + $0x20] sm:$0xf]
  %v36 = vld [vmem:[%s26 + $0x24] sm:$0xf]
  %v37 = vld [vmem:[%s26 + $0x28] sm:$0xf]
  %v38 = vld [vmem:[%s26 + $0x2c] sm:$0xf]
  %v39 = vld [vmem:[%s26 + $0x30] sm:$0xf]
  %v40 = vld [vmem:[%s26 + $0x34] sm:$0xf]
  %v41 = vld [vmem:[%s26 + $0x38] sm:$0xf]
  %v42 = vld [vmem:[%s26 + $0x3c] sm:$0xf]
  %v43 = vld [vmem:[#allocation2] sm:$0xff]
  %v44 = vld [vmem:[#allocation2 + $0x8] sm:$0xff]
  %v47 = vunpack.c.l.b16 %v20
  %v48 = vunpack.c.l.b16 %v21
  %v49 = vpack.c.b16 %v48, %v47
  %v67 = vunpack.c.l.b16 %v27
  %v68 = vunpack.c.l.b16 %v28
  %v69 = vunpack.c.l.b16 %v29
  %v70 = vunpack.c.l.b16 %v30
  %v71 = vunpack.c.l.b16 %v31
  %v72 = vunpack.c.l.b16 %v32
  %v73 = vunpack.c.l.b16 %v33
  %v74 = vunpack.c.l.b16 %v34
  %v75 = vunpack.c.l.b16 %v35
  %v76 = vunpack.c.l.b16 %v36
  %v77 = vunpack.c.l.b16 %v37
  %v78 = vunpack.c.l.b16 %v38
  %v79 = vunpack.c.l.b16 %v39
  %v80 = vunpack.c.l.b16 %v40
  %v81 = vunpack.c.l.b16 %v41
  %v82 = vunpack.c.l.b16 %v42
  %v83 = vpack.c.b16 %v68, %v67
  %v84 = vpack.c.b16 %v70, %v69
  %v85 = vpack.c.b16 %v72, %v71
  %v86 = vpack.c.b16 %v74, %v73
  %v87 = vpack.c.b16 %v76, %v75
  %v88 = vpack.c.b16 %v78, %v77
  %v89 = vpack.c.b16 %v80, %v79
  %v90 = vpack.c.b16 %v82, %v81
  %99 = vmatpush.bf16.msra.mxu0 %v90
  %100 = vmatpush.bf16.msra.mxu0 %v89
  %101 = vmatpush.bf16.msra.mxu0 %v88
  %102 = vmatpush.bf16.msra.mxu0 %v87
  %103 = vmatpush.bf16.msra.mxu0 %v86
  %104 = vmatpush.bf16.msra.mxu0 %v85
  %105 = vmatpush.bf16.msra.mxu0 %v84
  %106 = vmatpush.bf16.msra.mxu0 %v83
  %107 = vmatmul.bf16.gmra.mxu0 %v49
  %v108 = vpop.f32.mrf.mxu0
  %v109 = vadd.f32 0.0, %v108
  %v110 = vpop.f32.mrf.mxu0
  %v111 = vadd.f32 0.0, %v110
  %112 = vdwg.mxu0
  %v113 = vadd.f32 %v43, %v109
  %v114 = vadd.f32 %v44, %v111
  %115 = vst [vmem:[#allocation2] sm:$0xff] %v113
  %116 = vst [vmem:[#allocation2 + $0x8] sm:$0xff] %v114
  // Predicated region
  $region18: #{model_gcn_forward.3} parent=0 // pred_check
    %p117 = pneg %p14
  $region19: #{model_gcn_forward.3} parent=0 // pred_check_branch
    %119 = sbr.rel (%p117) target = $region21
  $region20: #{model_gcn_forward.3} parent=0 // pred_region
    %v120 = vld [vmem:[#allocation2] sm:$0xff]
    %v121 = vld [vmem:[#allocation2 + $0x8] sm:$0xff]
    %v122 = vlaneseq
    %v123 = vand.u32 %v122, 127
    %vm124 = vcmp.eq.s32.totalorder %v123, 4
    %v125 = vsel %vm124, %v120, 0.0
    %v126 = vsel %vm124, %v121, 0.0
    %127 = vadd.xlane.f32.xlu0 %v125
    %v128 = vpop.xlane.xlu0 %127
    %129 = vadd.xlane.f32.xlu0 %v126
    %v130 = vpop.xlane.xlu0 %129
    %v131 = vmax.f32 %v128, 1.0
    %v132 = vmax.f32 %v130, 1.0
    %v133 = vrsqrt.pop %v131
    %v134 = vmul.f32 %v133, %v131
    %v135 = vmul.f32 %v134, %v133
    %v136 = vmul.f32 0.5, %v135
    %v137 = vsub.f32 1.5, %v136
    %v138 = vmul.f32 %v133, %v137
    %vm139 = vweird.f32 %v131
    %vm140 = vweird.f32 %v133
    %vm141 = vmor %vm139, %vm140
    %v142 = vsel %vm141, %v133, %v138
    %v143 = vrsqrt.pop %v132
    %v144 = vmul.f32 %v143, %v132
    %v145 = vmul.f32 %v144, %v143
    %v146 = vmul.f32 0.5, %v145
    %v147 = vsub.f32 1.5, %v146
    %v148 = vmul.f32 %v143, %v147
    %vm149 = vweird.f32 %v132
    %vm150 = vweird.f32 %v143
    %vm151 = vmor %vm149, %vm150
    %v152 = vsel %vm151, %v143, %v148
    %v153 = vmul.f32 %v120, %v142
    %v154 = vmul.f32 %v121, %v152
    %v155 = vld [vmem:[%s2] sm:$0x1]
    %v157 = vperm.slane %v155, 0
    %v159 = vadd.f32 %v153, %v157
    %v160 = vadd.f32 %v154, %v157
    %161 = vst [vmem:[%s3] sm:$0xff] %v159
    %162 = vst [vmem:[%s3 + $0x8] sm:$0xff] %v160
  $region21: #{model_gcn_forward.3} parent=0 // pred_fallthru
    _
  // Predicated region
  $region22: #{model_gcn_forward.3} parent=0 // pred_check
    _
  $region23: #{model_gcn_forward.3} parent=0 // pred_check_branch
    %164 = sbr.rel (0) target = $region25
  $region24: #{model_gcn_forward.3} parent=0 // pred_region
    _
  $region25: #{model_gcn_forward.3} parent=0 // pred_fallthru
    _
  // Predicated region
  $region26: #{model_gcn_forward.3} parent=0 // pred_check
    _
  $region27: #{model_gcn_forward.3} parent=0 // pred_check_branch
    %166 = sbr.rel (0) target = $region29
  $region28: #{model_gcn_forward.3} parent=0 // pred_region
    _
  $region29: #{model_gcn_forward.3} parent=0 // pred_fallthru
    _

</llo_original>
